<compile_context>
chip_gen: v7x
topology: tpu7x:2x2x1
jax: 0.10.0
libtpu: 0.0.40
codegen_flags: <defaults>
</compile_context>

<pallas_src>
import functools

import jax
import jax.numpy as jnp
from jax.experimental import pallas as pl
from jax.experimental.pallas import tpu as pltpu

LANE = 128                # gaussians per lane row
DEFAULT_BLOCK_ROWS = 16   # (16, 128) rows per grid step -> 2048 gaussians / step

# channel layouts
N_TRI_CH = 9    # v0x v0y v0z  v1x v1y v1z  v2x v2y v2z
N_PAR_CH = 10   # px py pz  sx sy sz  rw rx ry rz
N_OUT_CH = 13   # gx gy gz  qw qx qy qz  lsx lsy lsz  ex ey ez


# ---------------------------------------------------------------------------
# math (elementwise on per-component arrays; same code runs on (rows,128) tiles
# inside the kernel and on (n,) arrays in the plain-JAX reference)
# ---------------------------------------------------------------------------
def _gaussian_avatar_math(
        v0x, v0y, v0z, v1x, v1y, v1z, v2x, v2y, v2z,
        px, py, pz, sx, sy, sz, rw, rx, ry, rz):
    one_third = 1.0 / 3.0
    eps = 1e-20

    # triangle edges
    e1x, e1y, e1z = v1x - v0x, v1y - v0y, v1z - v0z
    e2x, e2y, e2z = v2x - v0x, v2y - v0y, v2z - v0z

    def cross3(ax, ay, az, bx, by, bz):
        return ay * bz - az * by, az * bx - ax * bz, ax * by - ay * bx

    # compute_face_orientation (GaussianAvatars): rotation columns a0, a1, a2
    # a0 = normalize(e1); reuse |e1|^2 for s0 below (s0 = |e1|^2 * rsqrt(|e1|^2) = |e1|).
    len1_sq = e1x * e1x + e1y * e1y + e1z * e1z
    inv1 = jax.lax.rsqrt(jnp.maximum(len1_sq, eps))
    a0x, a0y, a0z = e1x * inv1, e1y * inv1, e1z * inv1
    s0 = len1_sq * inv1

    c1x, c1y, c1z = cross3(a0x, a0y, a0z, e2x, e2y, e2z)
    invc1 = jax.lax.rsqrt(jnp.maximum(c1x * c1x + c1y * c1y + c1z * c1z, eps))
    a1x, a1y, a1z = c1x * invc1, c1y * invc1, c1z * invc1

    c2x, c2y, c2z = cross3(a1x, a1y, a1z, a0x, a0y, a0z)
    invc2 = jax.lax.rsqrt(jnp.maximum(c2x * c2x + c2y * c2y + c2z * c2z, eps))
    a2x, a2y, a2z = -c2x * invc2, -c2y * invc2, -c2z * invc2

    s1 = jnp.abs(a2x * e2x + a2y * e2y + a2z * e2z)
    face_scaling = 0.5 * (s0 + s1)
    fcx = (v0x + v1x + v2x) * one_third
    fcy = (v0y + v1y + v2y) * one_third
    fcz = (v0z + v1z + v2z) * one_third

    # matrix_to_quaternion (pytorch3d, branchless), R[i, j] = a_j[i]
    m00, m10, m20 = a0x, a0y, a0z
    m01, m11, m21 = a1x, a1y, a1z
    m02, m12, m22 = a2x, a2y, a2z

    def spp(x):  # sqrt of positive part
        return jnp.sqrt(jnp.maximum(x, 0.0))

    q0 = spp(1.0 + m00 + m11 + m22)
    q1 = spp(1.0 + m00 - m11 - m22)
    q2 = spp(1.0 - m00 + m11 - m22)
    q3 = spp(1.0 - m00 - m11 + m22)

    c0 = (q0 * q0, m21 - m12, m02 - m20, m10 - m01)
    c1 = (m21 - m12, q1 * q1, m10 + m01, m02 + m20)
    c2 = (m02 - m20, m10 + m01, q2 * q2, m12 + m21)
    c3 = (m10 - m01, m20 + m02, m21 + m12, q3 * q3)

    d0 = 0.5 / jnp.maximum(q0, 0.1)
    d1 = 0.5 / jnp.maximum(q1, 0.1)
    d2 = 0.5 / jnp.maximum(q2, 0.1)
    d3 = 0.5 / jnp.maximum(q3, 0.1)

    # branch selection == torch.argmax (first maximal index) over (q0..q3)
    s0_ = (q0 >= q1) & (q0 >= q2) & (q0 >= q3)
    s1_ = jnp.logical_not(s0_) & (q1 >= q2) & (q1 >= q3)
    s2_ = jnp.logical_not(s0_) & jnp.logical_not(s1_) & (q2 >= q3)

    quat = []
    for k in range(4):
        quat.append(jnp.where(s0_, c0[k] * d0,
                    jnp.where(s1_, c1[k] * d1,
                    jnp.where(s2_, c2[k] * d2, c3[k] * d3))))
    qw_, qx_, qy_, qz_ = quat

    # F.normalize(face_orien_quat) -- rsqrt form (common scale cancels downstream)
    inv_qn = jax.lax.rsqrt(
        jnp.maximum(qw_ * qw_ + qx_ * qx_ + qy_ * qy_ + qz_ * qz_, 1e-24))
    qw_, qx_, qy_, qz_ = qw_ * inv_qn, qx_ * inv_qn, qy_ * inv_qn, qz_ * inv_qn

    # quaternion_multiply(flame_quat, self._rotation) + pytorch3d standardization
    ow = qw_ * rw - qx_ * rx - qy_ * ry - qz_ * rz
    ox = qw_ * rx + qx_ * rw + qy_ * rz - qz_ * ry
    oy = qw_ * ry - qx_ * rz + qy_ * rw + qz_ * rx
    oz = qw_ * rz + qx_ * ry - qy_ * rx + qz_ * rw
    neg = ow < 0.0
    ow = jnp.where(neg, -ow, ow)
    ox = jnp.where(neg, -ox, ox)
    oy = jnp.where(neg, -oy, oy)
    oz = jnp.where(neg, -oz, oz)

    # gaussian._scaling = self._scaling + log(face_scaling)
    log_fs = jnp.log(face_scaling)
    lsx, lsy, lsz = sx + log_fs, sy + log_fs, sz + log_fs

    # gaussian._xyz = (R @ xyz) * face_scaling + face_center
    gx = (a0x * px + a1x * py + a2x * pz) * face_scaling + fcx
    gy = (a0y * px + a1y * py + a2y * pz) * face_scaling + fcy
    gz = (a0z * px + a1z * py + a2z * pz) * face_scaling + fcz

    # output 'scale' = exp(self._scaling) (raw parameter)
    ex, ey, ez = jnp.exp(sx), jnp.exp(sy), jnp.exp(sz)

    return (gx, gy, gz, ow, ox, oy, oz, lsx, lsy, lsz, ex, ey, ez)


# ---------------------------------------------------------------------------
# Pallas kernel
# ---------------------------------------------------------------------------
def _avatar_kernel(tri_ref, par_ref, out_ref):
    # each channel slice is a dense (block_rows, 128) tile -> full sublane utilization
    tri = [tri_ref[c] for c in range(N_TRI_CH)]
    par = [par_ref[c] for c in range(N_PAR_CH)]
    outs = _gaussian_avatar_math(*tri, *par)
    for c, val in enumerate(outs):
        out_ref[c] = val


@functools.partial(jax.jit, static_argnames=("block_rows",))
def gaussian_avatar_pallas(tri_pack, par_pack, *, block_rows=DEFAULT_BLOCK_ROWS):
    """tri_pack (9, NB, 128), par_pack (10, NB, 128) float32; NB % block_rows == 0."""
    nb = tri_pack.shape[1]
    assert tri_pack.shape == (N_TRI_CH, nb, LANE)
    assert par_pack.shape == (N_PAR_CH, nb, LANE)
    assert nb % block_rows == 0

    return pl.pallas_call(
        _avatar_kernel,
        out_shape=jax.ShapeDtypeStruct((N_OUT_CH, nb, LANE), jnp.float32),
        grid=(nb // block_rows,),
        in_specs=[
            pl.BlockSpec((N_TRI_CH, block_rows, LANE), lambda i: (0, i, 0)),
            pl.BlockSpec((N_PAR_CH, block_rows, LANE), lambda i: (0, i, 0)),
        ],
        out_specs=pl.BlockSpec((N_OUT_CH, block_rows, LANE), lambda i: (0, i, 0)),
        # 'parallel' lets the 1-D grid shard across the two TensorCores on v7x.
        compiler_params=pltpu.CompilerParams(
            dimension_semantics=("parallel",)),
    )(tri_pack, par_pack)


# ---------------------------------------------------------------------------
# packing helpers (wrapper glue)
# ---------------------------------------------------------------------------
def _padded_n(n, block_rows):
    tile = block_rows * LANE
    return ((n + tile - 1) // tile) * tile


def pack_params(_xyz, _scaling, _rotation, block_rows=DEFAULT_BLOCK_ROWS):
    """One-time repack of the static per-gaussian parameters into the kernel layout."""
    n = _xyz.shape[0]
    n_pad = _padded_n(n, block_rows)
    par = jnp.concatenate(
        [_xyz.astype(jnp.float32).T,        # (3, n)
         _scaling.astype(jnp.float32).T,    # (3, n)
         _rotation.astype(jnp.float32).T],  # (4, n)
        axis=0)                             # (10, n)
    if n_pad != n:
        par = jnp.pad(par, ((0, 0), (0, n_pad - n)))
    return par.reshape(N_PAR_CH, n_pad // LANE, LANE)


def _pack_triangles(verts, faces, binding, n_pad):
    # TODO(synk): in production, fold this gather into a per-face Pallas pass driven by
    #             scalar-prefetched binding indices to avoid the XLA transpose/pad passes.
    tri = verts[faces]                     # (F, 3, 3)
    tv = tri[binding]                      # (n, 3verts, 3coords)
    n = tv.shape[0]
    tri9 = tv.reshape(n, 9).T.astype(jnp.float32)       # (9, n): v0x v0y v0z v1x ... v2z
    if n_pad != n:
        tri9 = jnp.pad(tri9, ((0, 0), (0, n_pad - n)))  # padded lanes never feed valid lanes
    return tri9.reshape(N_TRI_CH, n_pad // LANE, LANE)


# ---------------------------------------------------------------------------
# wrapper that mimics GaussianAvatars.forward (geometry path)
# ---------------------------------------------------------------------------
def gaussian_avatars_forward(verts, faces, binding, _xyz, _scaling, _rotation,
                             par_pack=None, block_rows=DEFAULT_BLOCK_ROWS):
    n = binding.shape[0]
    n_pad = _padded_n(n, block_rows)
    if par_pack is None:
        par_pack = pack_params(_xyz, _scaling, _rotation, block_rows)
    tri_pack = _pack_triangles(verts, faces, binding, n_pad)

    out = gaussian_avatar_pallas(tri_pack, par_pack, block_rows=block_rows)
    flat = out.reshape(N_OUT_CH, n_pad)[:, :n]       # drop padded lanes

    return {
        "rgb_image": None,  # TODO(synk): gaussian-splatting rasterizer + Camera not implementable in Pallas here
        "scale": flat[10:13].T,              # exp(self._scaling), (N, 3)
        "xyz": _xyz,                         # raw parameter, (N, 3)
        "gaussian_xyz": flat[0:3].T,         # posed gaussian centers, (N, 3)
        "gaussian_rotation": flat[3:7].T,    # posed gaussian quats (wxyz), (N, 4)
        "gaussian_scaling": flat[7:10].T,    # posed log-scales, (N, 3)
        "bs": 1,
    }


if __name__ == "__main__":
    key = jax.random.PRNGKey(0)
    kb, k1, k2, kx, ks, kr = jax.random.split(key, 6)

    F = 2048   # number of FLAME faces == number of gaussians (binding = arange(F))
    SH = 3     # max_sh_degree

    # TODO(synk): FLAME deformation model (pickled generic_model.pkl) not available;
    # build a well-conditioned synthetic triangle soup (distinct, near-orthogonal edges)
    # so the orientation math is numerically well-posed.
    base = 0.5 * jax.random.normal(kb, (F, 3), dtype=jnp.float32)
    d1 = jax.random.normal(k1, (F, 3), dtype=jnp.float32)
    d1 = d1 / jnp.linalg.norm(d1, axis=1, keepdims=True)
    d2 = jax.random.normal(k2, (F, 3), dtype=jnp.float32)
    d2 = d2 - jnp.sum(d2 * d1, axis=1, keepdims=True) * d1
    d2 = d2 / jnp.linalg.norm(d2, axis=1, keepdims=True)
    verts = jnp.stack([base, base + 0.3 * d1, base + 0.2 * d2], axis=1).reshape(3 * F, 3)
    faces = jnp.arange(3 * F, dtype=jnp.int32).reshape(F, 3)
    binding = jnp.arange(F, dtype=jnp.int32)

    # gaussian parameters (shapes per _register_init_gaussian; small deterministic perturbations)
    _xyz = 0.1 * jax.random.normal(kx, (F, 3), dtype=jnp.float32)
    _scaling = 0.1 * jax.random.normal(ks, (F, 3), dtype=jnp.float32)
    _rotation = jnp.concatenate(
        [jnp.ones((F, 1), jnp.float32),
         0.1 * jax.random.normal(kr, (F, 3), dtype=jnp.float32)], axis=1)
    _features_dc = jnp.zeros((F, 1, 3), jnp.float32)                     # untouched by kernel
    _features_rest = jnp.zeros((F, (SH + 1) ** 2 - 1, 3), jnp.float32)   # untouched by kernel
    _opacity = jnp.log(jnp.full((F, 1), 0.1 / 0.9, jnp.float32))         # untouched by kernel

    # one-time persistent repack of the static params (avoids per-frame transposes/pads)
    par_pack = pack_params(_xyz, _scaling, _rotation)

    out = gaussian_avatars_forward(verts, faces, binding, _xyz, _scaling, _rotation,
                                   par_pack=par_pack)
    for k in ("scale", "gaussian_xyz", "gaussian_rotation", "gaussian_scaling"):
        jax.block_until_ready(out[k])

    # plain-JAX reference of the same hot-path math (runs outside Pallas)
    tri = verts[faces][binding]                     # (F, 3, 3)
    comps = (tuple(tri[:, k, c] for k in range(3) for c in range(3))
             + tuple(_xyz[:, c] for c in range(3))
             + tuple(_scaling[:, c] for c in range(3))
             + tuple(_rotation[:, c] for c in range(4)))
    ref = _gaussian_avatar_math(*comps)             # 13 arrays of shape (F,)
    ref_xyz = jnp.stack(ref[0:3], axis=1)
    ref_rot = jnp.stack(ref[3:7], axis=1)
    ref_scl = jnp.stack(ref[7:10], axis=1)
    ref_exp = jnp.stack(ref[10:13], axis=1)

    def close(a, b):
        return bool(jnp.allclose(a, b, atol=1e-4, rtol=1e-4))

    assert close(out["gaussian_xyz"], ref_xyz), "gaussian_xyz mismatch"
    assert close(out["gaussian_rotation"], ref_rot), "gaussian_rotation mismatch"
    assert close(out["gaussian_scaling"], ref_scl), "gaussian_scaling mismatch"
    assert close(out["scale"], ref_exp), "scale mismatch"

    print("KERNEL_OK")
</pallas_src>

<mosaic_0001>
module attributes {stable_mosaic.version = 11 : i64} {
  func.func @_avatar_kernel(%arg0: i32, %arg1: memref<9x16x128xf32, #tpu.memory_space<vmem>>, %arg2: memref<10x16x128xf32, #tpu.memory_space<vmem>>, %arg3: memref<13x16x128xf32, #tpu.memory_space<vmem>>) attributes {dimension_semantics = [#tpu.dimension_semantics<parallel>], iteration_bounds = array<i64: 1>, scalar_prefetch = 0 : i64, scratch_operands = 0 : i64, tpu.core_type = #tpu.core_type<tc>, window_params = [{transform_indices = @transform_0, window_bounds = array<i64: 9, 16, 128>}, {transform_indices = @transform_1, window_bounds = array<i64: 10, 16, 128>}, {transform_indices = @transform_2, window_bounds = array<i64: 13, 16, 128>}]} {
    %c0 = arith.constant 0 : index
    %c0_0 = arith.constant 0 : index
    %c0_1 = arith.constant 0 : index
    %0 = vector.load %arg1[%c0, %c0_0, %c0_1] : memref<9x16x128xf32, #tpu.memory_space<vmem>>, vector<1x16x128xf32>
    %1 = vector.shape_cast %0 : vector<1x16x128xf32> to vector<16x128xf32>
    %c1 = arith.constant 1 : index
    %c0_2 = arith.constant 0 : index
    %c0_3 = arith.constant 0 : index
    %2 = vector.load %arg1[%c1, %c0_2, %c0_3] : memref<9x16x128xf32, #tpu.memory_space<vmem>>, vector<1x16x128xf32>
    %3 = vector.shape_cast %2 : vector<1x16x128xf32> to vector<16x128xf32>
    %c2 = arith.constant 2 : index
    %c0_4 = arith.constant 0 : index
    %c0_5 = arith.constant 0 : index
    %4 = vector.load %arg1[%c2, %c0_4, %c0_5] : memref<9x16x128xf32, #tpu.memory_space<vmem>>, vector<1x16x128xf32>
    %5 = vector.shape_cast %4 : vector<1x16x128xf32> to vector<16x128xf32>
    %c3 = arith.constant 3 : index
    %c0_6 = arith.constant 0 : index
    %c0_7 = arith.constant 0 : index
    %6 = vector.load %arg1[%c3, %c0_6, %c0_7] : memref<9x16x128xf32, #tpu.memory_space<vmem>>, vector<1x16x128xf32>
    %7 = vector.shape_cast %6 : vector<1x16x128xf32> to vector<16x128xf32>
    %c4 = arith.constant 4 : index
    %c0_8 = arith.constant 0 : index
    %c0_9 = arith.constant 0 : index
    %8 = vector.load %arg1[%c4, %c0_8, %c0_9] : memref<9x16x128xf32, #tpu.memory_space<vmem>>, vector<1x16x128xf32>
    %9 = vector.shape_cast %8 : vector<1x16x128xf32> to vector<16x128xf32>
    %c5 = arith.constant 5 : index
    %c0_10 = arith.constant 0 : index
    %c0_11 = arith.constant 0 : index
    %10 = vector.load %arg1[%c5, %c0_10, %c0_11] : memref<9x16x128xf32, #tpu.memory_space<vmem>>, vector<1x16x128xf32>
    %11 = vector.shape_cast %10 : vector<1x16x128xf32> to vector<16x128xf32>
    %c6 = arith.constant 6 : index
    %c0_12 = arith.constant 0 : index
    %c0_13 = arith.constant 0 : index
    %12 = vector.load %arg1[%c6, %c0_12, %c0_13] : memref<9x16x128xf32, #tpu.memory_space<vmem>>, vector<1x16x128xf32>
    %13 = vector.shape_cast %12 : vector<1x16x128xf32> to vector<16x128xf32>
    %c7 = arith.constant 7 : index
    %c0_14 = arith.constant 0 : index
    %c0_15 = arith.constant 0 : index
    %14 = vector.load %arg1[%c7, %c0_14, %c0_15] : memref<9x16x128xf32, #tpu.memory_space<vmem>>, vector<1x16x128xf32>
    %15 = vector.shape_cast %14 : vector<1x16x128xf32> to vector<16x128xf32>
    %c8 = arith.constant 8 : index
    %c0_16 = arith.constant 0 : index
    %c0_17 = arith.constant 0 : index
    %16 = vector.load %arg1[%c8, %c0_16, %c0_17] : memref<9x16x128xf32, #tpu.memory_space<vmem>>, vector<1x16x128xf32>
    %17 = vector.shape_cast %16 : vector<1x16x128xf32> to vector<16x128xf32>
    %c0_18 = arith.constant 0 : index
    %c0_19 = arith.constant 0 : index
    %c0_20 = arith.constant 0 : index
    %18 = vector.load %arg2[%c0_18, %c0_19, %c0_20] : memref<10x16x128xf32, #tpu.memory_space<vmem>>, vector<1x16x128xf32>
    %19 = vector.shape_cast %18 : vector<1x16x128xf32> to vector<16x128xf32>
    %c1_21 = arith.constant 1 : index
    %c0_22 = arith.constant 0 : index
    %c0_23 = arith.constant 0 : index
    %20 = vector.load %arg2[%c1_21, %c0_22, %c0_23] : memref<10x16x128xf32, #tpu.memory_space<vmem>>, vector<1x16x128xf32>
    %21 = vector.shape_cast %20 : vector<1x16x128xf32> to vector<16x128xf32>
    %c2_24 = arith.constant 2 : index
    %c0_25 = arith.constant 0 : index
    %c0_26 = arith.constant 0 : index
    %22 = vector.load %arg2[%c2_24, %c0_25, %c0_26] : memref<10x16x128xf32, #tpu.memory_space<vmem>>, vector<1x16x128xf32>
    %23 = vector.shape_cast %22 : vector<1x16x128xf32> to vector<16x128xf32>
    %c3_27 = arith.constant 3 : index
    %c0_28 = arith.constant 0 : index
    %c0_29 = arith.constant 0 : index
    %24 = vector.load %arg2[%c3_27, %c0_28, %c0_29] : memref<10x16x128xf32, #tpu.memory_space<vmem>>, vector<1x16x128xf32>
    %25 = vector.shape_cast %24 : vector<1x16x128xf32> to vector<16x128xf32>
    %c4_30 = arith.constant 4 : index
    %c0_31 = arith.constant 0 : index
    %c0_32 = arith.constant 0 : index
    %26 = vector.load %arg2[%c4_30, %c0_31, %c0_32] : memref<10x16x128xf32, #tpu.memory_space<vmem>>, vector<1x16x128xf32>
    %27 = vector.shape_cast %26 : vector<1x16x128xf32> to vector<16x128xf32>
    %c5_33 = arith.constant 5 : index
    %c0_34 = arith.constant 0 : index
    %c0_35 = arith.constant 0 : index
    %28 = vector.load %arg2[%c5_33, %c0_34, %c0_35] : memref<10x16x128xf32, #tpu.memory_space<vmem>>, vector<1x16x128xf32>
    %29 = vector.shape_cast %28 : vector<1x16x128xf32> to vector<16x128xf32>
    %c6_36 = arith.constant 6 : index
    %c0_37 = arith.constant 0 : index
    %c0_38 = arith.constant 0 : index
    %30 = vector.load %arg2[%c6_36, %c0_37, %c0_38] : memref<10x16x128xf32, #tpu.memory_space<vmem>>, vector<1x16x128xf32>
    %31 = vector.shape_cast %30 : vector<1x16x128xf32> to vector<16x128xf32>
    %c7_39 = arith.constant 7 : index
    %c0_40 = arith.constant 0 : index
    %c0_41 = arith.constant 0 : index
    %32 = vector.load %arg2[%c7_39, %c0_40, %c0_41] : memref<10x16x128xf32, #tpu.memory_space<vmem>>, vector<1x16x128xf32>
    %33 = vector.shape_cast %32 : vector<1x16x128xf32> to vector<16x128xf32>
    %c8_42 = arith.constant 8 : index
    %c0_43 = arith.constant 0 : index
    %c0_44 = arith.constant 0 : index
    %34 = vector.load %arg2[%c8_42, %c0_43, %c0_44] : memref<10x16x128xf32, #tpu.memory_space<vmem>>, vector<1x16x128xf32>
    %35 = vector.shape_cast %34 : vector<1x16x128xf32> to vector<16x128xf32>
    %c9 = arith.constant 9 : index
    %c0_45 = arith.constant 0 : index
    %c0_46 = arith.constant 0 : index
    %36 = vector.load %arg2[%c9, %c0_45, %c0_46] : memref<10x16x128xf32, #tpu.memory_space<vmem>>, vector<1x16x128xf32>
    %37 = vector.shape_cast %36 : vector<1x16x128xf32> to vector<16x128xf32>
    %38 = arith.subf %7, %1 : vector<16x128xf32>
    %39 = arith.subf %9, %3 : vector<16x128xf32>
    %40 = arith.subf %11, %5 : vector<16x128xf32>
    %41 = arith.subf %13, %1 : vector<16x128xf32>
    %42 = arith.subf %15, %3 : vector<16x128xf32>
    %43 = arith.subf %17, %5 : vector<16x128xf32>
    %44 = arith.mulf %38, %38 : vector<16x128xf32>
    %45 = arith.mulf %39, %39 : vector<16x128xf32>
    %46 = arith.addf %44, %45 : vector<16x128xf32>
    %47 = arith.mulf %40, %40 : vector<16x128xf32>
    %48 = arith.addf %46, %47 : vector<16x128xf32>
    %cst = arith.constant 9.99999968E-21 : f32
    %49 = vector.broadcast %cst : f32 to vector<16x128xf32>
    %50 = arith.maximumf %48, %49 : vector<16x128xf32>
    %51 = math.rsqrt %50 : vector<16x128xf32>
    %52 = arith.mulf %38, %51 : vector<16x128xf32>
    %53 = arith.mulf %39, %51 : vector<16x128xf32>
    %54 = arith.mulf %40, %51 : vector<16x128xf32>
    %55 = arith.mulf %48, %51 : vector<16x128xf32>
    %56 = arith.mulf %53, %43 : vector<16x128xf32>
    %57 = arith.mulf %54, %42 : vector<16x128xf32>
    %58 = arith.subf %56, %57 : vector<16x128xf32>
    %59 = arith.mulf %54, %41 : vector<16x128xf32>
    %60 = arith.mulf %52, %43 : vector<16x128xf32>
    %61 = arith.subf %59, %60 : vector<16x128xf32>
    %62 = arith.mulf %52, %42 : vector<16x128xf32>
    %63 = arith.mulf %53, %41 : vector<16x128xf32>
    %64 = arith.subf %62, %63 : vector<16x128xf32>
    %65 = arith.mulf %58, %58 : vector<16x128xf32>
    %66 = arith.mulf %61, %61 : vector<16x128xf32>
    %67 = arith.addf %65, %66 : vector<16x128xf32>
    %68 = arith.mulf %64, %64 : vector<16x128xf32>
    %69 = arith.addf %67, %68 : vector<16x128xf32>
    %cst_47 = arith.constant 9.99999968E-21 : f32
    %70 = vector.broadcast %cst_47 : f32 to vector<16x128xf32>
    %71 = arith.maximumf %69, %70 : vector<16x128xf32>
    %72 = math.rsqrt %71 : vector<16x128xf32>
    %73 = arith.mulf %58, %72 : vector<16x128xf32>
    %74 = arith.mulf %61, %72 : vector<16x128xf32>
    %75 = arith.mulf %64, %72 : vector<16x128xf32>
    %76 = arith.mulf %74, %54 : vector<16x128xf32>
    %77 = arith.mulf %75, %53 : vector<16x128xf32>
    %78 = arith.subf %76, %77 : vector<16x128xf32>
    %79 = arith.mulf %75, %52 : vector<16x128xf32>
    %80 = arith.mulf %73, %54 : vector<16x128xf32>
    %81 = arith.subf %79, %80 : vector<16x128xf32>
    %82 = arith.mulf %73, %53 : vector<16x128xf32>
    %83 = arith.mulf %74, %52 : vector<16x128xf32>
    %84 = arith.subf %82, %83 : vector<16x128xf32>
    %85 = arith.mulf %78, %78 : vector<16x128xf32>
    %86 = arith.mulf %81, %81 : vector<16x128xf32>
    %87 = arith.addf %85, %86 : vector<16x128xf32>
    %88 = arith.mulf %84, %84 : vector<16x128xf32>
    %89 = arith.addf %87, %88 : vector<16x128xf32>
    %cst_48 = arith.constant 9.99999968E-21 : f32
    %90 = vector.broadcast %cst_48 : f32 to vector<16x128xf32>
    %91 = arith.maximumf %89, %90 : vector<16x128xf32>
    %92 = math.rsqrt %91 : vector<16x128xf32>
    %cst_49 = arith.constant 0.000000e+00 : f32
    %93 = vector.broadcast %cst_49 : f32 to vector<16x128xf32>
    %94 = arith.subf %93, %78 : vector<16x128xf32>
    %95 = arith.mulf %94, %92 : vector<16x128xf32>
    %cst_50 = arith.constant 0.000000e+00 : f32
    %96 = vector.broadcast %cst_50 : f32 to vector<16x128xf32>
    %97 = arith.subf %96, %81 : vector<16x128xf32>
    %98 = arith.mulf %97, %92 : vector<16x128xf32>
    %cst_51 = arith.constant 0.000000e+00 : f32
    %99 = vector.broadcast %cst_51 : f32 to vector<16x128xf32>
    %100 = arith.subf %99, %84 : vector<16x128xf32>
    %101 = arith.mulf %100, %92 : vector<16x128xf32>
    %102 = arith.mulf %95, %41 : vector<16x128xf32>
    %103 = arith.mulf %98, %42 : vector<16x128xf32>
    %104 = arith.addf %102, %103 : vector<16x128xf32>
    %105 = arith.mulf %101, %43 : vector<16x128xf32>
    %106 = arith.addf %104, %105 : vector<16x128xf32>
    %107 = math.absf %106 : vector<16x128xf32>
    %108 = arith.addf %55, %107 : vector<16x128xf32>
    %cst_52 = arith.constant 5.000000e-01 : f32
    %109 = vector.broadcast %cst_52 : f32 to vector<16x128xf32>
    %110 = arith.mulf %109, %108 : vector<16x128xf32>
    %111 = arith.addf %1, %7 : vector<16x128xf32>
    %112 = arith.addf %111, %13 : vector<16x128xf32>
    %cst_53 = arith.constant 0.333333343 : f32
    %113 = vector.broadcast %cst_53 : f32 to vector<16x128xf32>
    %114 = arith.mulf %112, %113 : vector<16x128xf32>
    %115 = arith.addf %3, %9 : vector<16x128xf32>
    %116 = arith.addf %115, %15 : vector<16x128xf32>
    %cst_54 = arith.constant 0.333333343 : f32
    %117 = vector.broadcast %cst_54 : f32 to vector<16x128xf32>
    %118 = arith.mulf %116, %117 : vector<16x128xf32>
    %119 = arith.addf %5, %11 : vector<16x128xf32>
    %120 = arith.addf %119, %17 : vector<16x128xf32>
    %cst_55 = arith.constant 0.333333343 : f32
    %121 = vector.broadcast %cst_55 : f32 to vector<16x128xf32>
    %122 = arith.mulf %120, %121 : vector<16x128xf32>
    %cst_56 = arith.constant 1.000000e+00 : f32
    %123 = vector.broadcast %cst_56 : f32 to vector<16x128xf32>
    %124 = arith.addf %123, %52 : vector<16x128xf32>
    %125 = arith.addf %124, %74 : vector<16x128xf32>
    %126 = arith.addf %125, %101 : vector<16x128xf32>
    %cst_57 = arith.constant 0.000000e+00 : f32
    %127 = vector.broadcast %cst_57 : f32 to vector<16x128xf32>
    %128 = arith.maximumf %126, %127 : vector<16x128xf32>
    %129 = math.sqrt %128 : vector<16x128xf32>
    %cst_58 = arith.constant 1.000000e+00 : f32
    %130 = vector.broadcast %cst_58 : f32 to vector<16x128xf32>
    %131 = arith.addf %130, %52 : vector<16x128xf32>
    %132 = arith.subf %131, %74 : vector<16x128xf32>
    %133 = arith.subf %132, %101 : vector<16x128xf32>
    %cst_59 = arith.constant 0.000000e+00 : f32
    %134 = vector.broadcast %cst_59 : f32 to vector<16x128xf32>
    %135 = arith.maximumf %133, %134 : vector<16x128xf32>
    %136 = math.sqrt %135 : vector<16x128xf32>
    %cst_60 = arith.constant 1.000000e+00 : f32
    %137 = vector.broadcast %cst_60 : f32 to vector<16x128xf32>
    %138 = arith.subf %137, %52 : vector<16x128xf32>
    %139 = arith.addf %138, %74 : vector<16x128xf32>
    %140 = arith.subf %139, %101 : vector<16x128xf32>
    %cst_61 = arith.constant 0.000000e+00 : f32
    %141 = vector.broadcast %cst_61 : f32 to vector<16x128xf32>
    %142 = arith.maximumf %140, %141 : vector<16x128xf32>
    %143 = math.sqrt %142 : vector<16x128xf32>
    %cst_62 = arith.constant 1.000000e+00 : f32
    %144 = vector.broadcast %cst_62 : f32 to vector<16x128xf32>
    %145 = arith.subf %144, %52 : vector<16x128xf32>
    %146 = arith.subf %145, %74 : vector<16x128xf32>
    %147 = arith.addf %146, %101 : vector<16x128xf32>
    %cst_63 = arith.constant 0.000000e+00 : f32
    %148 = vector.broadcast %cst_63 : f32 to vector<16x128xf32>
    %149 = arith.maximumf %147, %148 : vector<16x128xf32>
    %150 = math.sqrt %149 : vector<16x128xf32>
    %151 = arith.mulf %129, %129 : vector<16x128xf32>
    %152 = arith.subf %75, %98 : vector<16x128xf32>
    %153 = arith.subf %95, %54 : vector<16x128xf32>
    %154 = arith.subf %53, %73 : vector<16x128xf32>
    %155 = arith.subf %75, %98 : vector<16x128xf32>
    %156 = arith.mulf %136, %136 : vector<16x128xf32>
    %157 = arith.addf %53, %73 : vector<16x128xf32>
    %158 = arith.addf %95, %54 : vector<16x128xf32>
    %159 = arith.subf %95, %54 : vector<16x128xf32>
    %160 = arith.addf %53, %73 : vector<16x128xf32>
    %161 = arith.mulf %143, %143 : vector<16x128xf32>
    %162 = arith.addf %98, %75 : vector<16x128xf32>
    %163 = arith.subf %53, %73 : vector<16x128xf32>
    %164 = arith.addf %54, %95 : vector<16x128xf32>
    %165 = arith.addf %75, %98 : vector<16x128xf32>
    %166 = arith.mulf %150, %150 : vector<16x128xf32>
    %cst_64 = arith.constant 1.000000e-01 : f32
    %167 = vector.broadcast %cst_64 : f32 to vector<16x128xf32>
    %168 = arith.maximumf %129, %167 : vector<16x128xf32>
    %cst_65 = arith.constant 5.000000e-01 : f32
    %169 = vector.broadcast %cst_65 : f32 to vector<16x128xf32>
    %170 = arith.divf %169, %168 : vector<16x128xf32>
    %cst_66 = arith.constant 1.000000e-01 : f32
    %171 = vector.broadcast %cst_66 : f32 to vector<16x128xf32>
    %172 = arith.maximumf %136, %171 : vector<16x128xf32>
    %cst_67 = arith.constant 5.000000e-01 : f32
    %173 = vector.broadcast %cst_67 : f32 to vector<16x128xf32>
    %174 = arith.divf %173, %172 : vector<16x128xf32>
    %cst_68 = arith.constant 1.000000e-01 : f32
    %175 = vector.broadcast %cst_68 : f32 to vector<16x128xf32>
    %176 = arith.maximumf %143, %175 : vector<16x128xf32>
    %cst_69 = arith.constant 5.000000e-01 : f32
    %177 = vector.broadcast %cst_69 : f32 to vector<16x128xf32>
    %178 = arith.divf %177, %176 : vector<16x128xf32>
    %cst_70 = arith.constant 1.000000e-01 : f32
    %179 = vector.broadcast %cst_70 : f32 to vector<16x128xf32>
    %180 = arith.maximumf %150, %179 : vector<16x128xf32>
    %cst_71 = arith.constant 5.000000e-01 : f32
    %181 = vector.broadcast %cst_71 : f32 to vector<16x128xf32>
    %182 = arith.divf %181, %180 : vector<16x128xf32>
    %183 = arith.cmpf oge, %129, %136 : vector<16x128xf32>
    %184 = arith.cmpf oge, %129, %143 : vector<16x128xf32>
    %185 = arith.andi %183, %184 : vector<16x128xi1>
    %186 = arith.cmpf oge, %129, %150 : vector<16x128xf32>
    %187 = arith.andi %185, %186 : vector<16x128xi1>
    %cst_72 = arith.constant dense<true> : vector<16x128xi1>
    %188 = arith.xori %187, %cst_72 : vector<16x128xi1>
    %189 = arith.cmpf oge, %136, %143 : vector<16x128xf32>
    %190 = arith.andi %188, %189 : vector<16x128xi1>
    %191 = arith.cmpf oge, %136, %150 : vector<16x128xf32>
    %192 = arith.andi %190, %191 : vector<16x128xi1>
    %cst_73 = arith.constant dense<true> : vector<16x128xi1>
    %193 = arith.xori %187, %cst_73 : vector<16x128xi1>
    %cst_74 = arith.constant dense<true> : vector<16x128xi1>
    %194 = arith.xori %192, %cst_74 : vector<16x128xi1>
    %195 = arith.andi %193, %194 : vector<16x128xi1>
    %196 = arith.cmpf oge, %143, %150 : vector<16x128xf32>
    %197 = arith.andi %195, %196 : vector<16x128xi1>
    %198 = arith.mulf %151, %170 : vector<16x128xf32>
    %199 = arith.mulf %155, %174 : vector<16x128xf32>
    %200 = arith.mulf %159, %178 : vector<16x128xf32>
    %201 = arith.mulf %163, %182 : vector<16x128xf32>
    %202 = arith.select %197, %200, %201 : vector<16x128xi1>, vector<16x128xf32>
    %203 = arith.select %192, %199, %202 : vector<16x128xi1>, vector<16x128xf32>
    %204 = arith.select %187, %198, %203 : vector<16x128xi1>, vector<16x128xf32>
    %205 = arith.mulf %152, %170 : vector<16x128xf32>
    %206 = arith.mulf %156, %174 : vector<16x128xf32>
    %207 = arith.mulf %160, %178 : vector<16x128xf32>
    %208 = arith.mulf %164, %182 : vector<16x128xf32>
    %209 = arith.select %197, %207, %208 : vector<16x128xi1>, vector<16x128xf32>
    %210 = arith.select %192, %206, %209 : vector<16x128xi1>, vector<16x128xf32>
    %211 = arith.select %187, %205, %210 : vector<16x128xi1>, vector<16x128xf32>
    %212 = arith.mulf %153, %170 : vector<16x128xf32>
    %213 = arith.mulf %157, %174 : vector<16x128xf32>
    %214 = arith.mulf %161, %178 : vector<16x128xf32>
    %215 = arith.mulf %165, %182 : vector<16x128xf32>
    %216 = arith.select %197, %214, %215 : vector<16x128xi1>, vector<16x128xf32>
    %217 = arith.select %192, %213, %216 : vector<16x128xi1>, vector<16x128xf32>
    %218 = arith.select %187, %212, %217 : vector<16x128xi1>, vector<16x128xf32>
    %219 = arith.mulf %154, %170 : vector<16x128xf32>
    %220 = arith.mulf %158, %174 : vector<16x128xf32>
    %221 = arith.mulf %162, %178 : vector<16x128xf32>
    %222 = arith.mulf %166, %182 : vector<16x128xf32>
    %223 = arith.select %197, %221, %222 : vector<16x128xi1>, vector<16x128xf32>
    %224 = arith.select %192, %220, %223 : vector<16x128xi1>, vector<16x128xf32>
    %225 = arith.select %187, %219, %224 : vector<16x128xi1>, vector<16x128xf32>
    %226 = arith.mulf %204, %204 : vector<16x128xf32>
    %227 = arith.mulf %211, %211 : vector<16x128xf32>
    %228 = arith.addf %226, %227 : vector<16x128xf32>
    %229 = arith.mulf %218, %218 : vector<16x128xf32>
    %230 = arith.addf %228, %229 : vector<16x128xf32>
    %231 = arith.mulf %225, %225 : vector<16x128xf32>
    %232 = arith.addf %230, %231 : vector<16x128xf32>
    %cst_75 = arith.constant 1.000000e-24 : f32
    %233 = vector.broadcast %cst_75 : f32 to vector<16x128xf32>
    %234 = arith.maximumf %232, %233 : vector<16x128xf32>
    %235 = math.rsqrt %234 : vector<16x128xf32>
    %236 = arith.mulf %204, %235 : vector<16x128xf32>
    %237 = arith.mulf %211, %235 : vector<16x128xf32>
    %238 = arith.mulf %218, %235 : vector<16x128xf32>
    %239 = arith.mulf %225, %235 : vector<16x128xf32>
    %240 = arith.mulf %236, %31 : vector<16x128xf32>
    %241 = arith.mulf %237, %33 : vector<16x128xf32>
    %242 = arith.subf %240, %241 : vector<16x128xf32>
    %243 = arith.mulf %238, %35 : vector<16x128xf32>
    %244 = arith.subf %242, %243 : vector<16x128xf32>
    %245 = arith.mulf %239, %37 : vector<16x128xf32>
    %246 = arith.subf %244, %245 : vector<16x128xf32>
    %247 = arith.mulf %236, %33 : vector<16x128xf32>
    %248 = arith.mulf %237, %31 : vector<16x128xf32>
    %249 = arith.addf %247, %248 : vector<16x128xf32>
    %250 = arith.mulf %238, %37 : vector<16x128xf32>
    %251 = arith.addf %249, %250 : vector<16x128xf32>
    %252 = arith.mulf %239, %35 : vector<16x128xf32>
    %253 = arith.subf %251, %252 : vector<16x128xf32>
    %254 = arith.mulf %236, %35 : vector<16x128xf32>
    %255 = arith.mulf %237, %37 : vector<16x128xf32>
    %256 = arith.subf %254, %255 : vector<16x128xf32>
    %257 = arith.mulf %238, %31 : vector<16x128xf32>
    %258 = arith.addf %256, %257 : vector<16x128xf32>
    %259 = arith.mulf %239, %33 : vector<16x128xf32>
    %260 = arith.addf %258, %259 : vector<16x128xf32>
    %261 = arith.mulf %236, %37 : vector<16x128xf32>
    %262 = arith.mulf %237, %35 : vector<16x128xf32>
    %263 = arith.addf %261, %262 : vector<16x128xf32>
    %264 = arith.mulf %238, %33 : vector<16x128xf32>
    %265 = arith.subf %263, %264 : vector<16x128xf32>
    %266 = arith.mulf %239, %31 : vector<16x128xf32>
    %267 = arith.addf %265, %266 : vector<16x128xf32>
    %cst_76 = arith.constant 0.000000e+00 : f32
    %268 = vector.broadcast %cst_76 : f32 to vector<16x128xf32>
    %269 = arith.cmpf olt, %246, %268 : vector<16x128xf32>
    %cst_77 = arith.constant 0.000000e+00 : f32
    %270 = vector.broadcast %cst_77 : f32 to vector<16x128xf32>
    %271 = arith.subf %270, %246 : vector<16x128xf32>
    %272 = arith.select %269, %271, %246 : vector<16x128xi1>, vector<16x128xf32>
    %cst_78 = arith.constant 0.000000e+00 : f32
    %273 = vector.broadcast %cst_78 : f32 to vector<16x128xf32>
    %274 = arith.subf %273, %253 : vector<16x128xf32>
    %275 = arith.select %269, %274, %253 : vector<16x128xi1>, vector<16x128xf32>
    %cst_79 = arith.constant 0.000000e+00 : f32
    %276 = vector.broadcast %cst_79 : f32 to vector<16x128xf32>
    %277 = arith.subf %276, %260 : vector<16x128xf32>
    %278 = arith.select %269, %277, %260 : vector<16x128xi1>, vector<16x128xf32>
    %cst_80 = arith.constant 0.000000e+00 : f32
    %279 = vector.broadcast %cst_80 : f32 to vector<16x128xf32>
    %280 = arith.subf %279, %267 : vector<16x128xf32>
    %281 = arith.select %269, %280, %267 : vector<16x128xi1>, vector<16x128xf32>
    %282 = math.log %110 : vector<16x128xf32>
    %283 = arith.addf %25, %282 : vector<16x128xf32>
    %284 = arith.addf %27, %282 : vector<16x128xf32>
    %285 = arith.addf %29, %282 : vector<16x128xf32>
    %286 = arith.mulf %52, %19 : vector<16x128xf32>
    %287 = arith.mulf %73, %21 : vector<16x128xf32>
    %288 = arith.addf %286, %287 : vector<16x128xf32>
    %289 = arith.mulf %95, %23 : vector<16x128xf32>
    %290 = arith.addf %288, %289 : vector<16x128xf32>
    %291 = arith.mulf %290, %110 : vector<16x128xf32>
    %292 = arith.addf %291, %114 : vector<16x128xf32>
    %293 = arith.mulf %53, %19 : vector<16x128xf32>
    %294 = arith.mulf %74, %21 : vector<16x128xf32>
    %295 = arith.addf %293, %294 : vector<16x128xf32>
    %296 = arith.mulf %98, %23 : vector<16x128xf32>
    %297 = arith.addf %295, %296 : vector<16x128xf32>
    %298 = arith.mulf %297, %110 : vector<16x128xf32>
    %299 = arith.addf %298, %118 : vector<16x128xf32>
    %300 = arith.mulf %54, %19 : vector<16x128xf32>
    %301 = arith.mulf %75, %21 : vector<16x128xf32>
    %302 = arith.addf %300, %301 : vector<16x128xf32>
    %303 = arith.mulf %101, %23 : vector<16x128xf32>
    %304 = arith.addf %302, %303 : vector<16x128xf32>
    %305 = arith.mulf %304, %110 : vector<16x128xf32>
    %306 = arith.addf %305, %122 : vector<16x128xf32>
    %307 = math.exp %25 : vector<16x128xf32>
    %308 = math.exp %27 : vector<16x128xf32>
    %309 = math.exp %29 : vector<16x128xf32>
    %c0_81 = arith.constant 0 : index
    %c0_82 = arith.constant 0 : index
    %c0_83 = arith.constant 0 : index
    %310 = vector.load %arg3[%c0_81, %c0_82, %c0_83] : memref<13x16x128xf32, #tpu.memory_space<vmem>>, vector<1x16x128xf32>
    %311 = vector.shape_cast %310 : vector<1x16x128xf32> to vector<16x128xf32>
    %312 = vector.shape_cast %292 : vector<16x128xf32> to vector<1x16x128xf32>
    tpu.vector_store %arg3[%c0_81, %c0_82, %c0_83], %312 {strides = array<i32>} : memref<13x16x128xf32, #tpu.memory_space<vmem>>, vector<1x16x128xf32>,
    %c1_84 = arith.constant 1 : index
    %c0_85 = arith.constant 0 : index
    %c0_86 = arith.constant 0 : index
    %313 = vector.load %arg3[%c1_84, %c0_85, %c0_86] : memref<13x16x128xf32, #tpu.memory_space<vmem>>, vector<1x16x128xf32>
    %314 = vector.shape_cast %313 : vector<1x16x128xf32> to vector<16x128xf32>
    %315 = vector.shape_cast %299 : vector<16x128xf32> to vector<1x16x128xf32>
    tpu.vector_store %arg3[%c1_84, %c0_85, %c0_86], %315 {strides = array<i32>} : memref<13x16x128xf32, #tpu.memory_space<vmem>>, vector<1x16x128xf32>,
    %c2_87 = arith.constant 2 : index
    %c0_88 = arith.constant 0 : index
    %c0_89 = arith.constant 0 : index
    %316 = vector.load %arg3[%c2_87, %c0_88, %c0_89] : memref<13x16x128xf32, #tpu.memory_space<vmem>>, vector<1x16x128xf32>
    %317 = vector.shape_cast %316 : vector<1x16x128xf32> to vector<16x128xf32>
    %318 = vector.shape_cast %306 : vector<16x128xf32> to vector<1x16x128xf32>
    tpu.vector_store %arg3[%c2_87, %c0_88, %c0_89], %318 {strides = array<i32>} : memref<13x16x128xf32, #tpu.memory_space<vmem>>, vector<1x16x128xf32>,
    %c3_90 = arith.constant 3 : index
    %c0_91 = arith.constant 0 : index
    %c0_92 = arith.constant 0 : index
    %319 = vector.load %arg3[%c3_90, %c0_91, %c0_92] : memref<13x16x128xf32, #tpu.memory_space<vmem>>, vector<1x16x128xf32>
    %320 = vector.shape_cast %319 : vector<1x16x128xf32> to vector<16x128xf32>
    %321 = vector.shape_cast %272 : vector<16x128xf32> to vector<1x16x128xf32>
    tpu.vector_store %arg3[%c3_90, %c0_91, %c0_92], %321 {strides = array<i32>} : memref<13x16x128xf32, #tpu.memory_space<vmem>>, vector<1x16x128xf32>,
    %c4_93 = arith.constant 4 : index
    %c0_94 = arith.constant 0 : index
    %c0_95 = arith.constant 0 : index
    %322 = vector.load %arg3[%c4_93, %c0_94, %c0_95] : memref<13x16x128xf32, #tpu.memory_space<vmem>>, vector<1x16x128xf32>
    %323 = vector.shape_cast %322 : vector<1x16x128xf32> to vector<16x128xf32>
    %324 = vector.shape_cast %275 : vector<16x128xf32> to vector<1x16x128xf32>
    tpu.vector_store %arg3[%c4_93, %c0_94, %c0_95], %324 {strides = array<i32>} : memref<13x16x128xf32, #tpu.memory_space<vmem>>, vector<1x16x128xf32>,
    %c5_96 = arith.constant 5 : index
    %c0_97 = arith.constant 0 : index
    %c0_98 = arith.constant 0 : index
    %325 = vector.load %arg3[%c5_96, %c0_97, %c0_98] : memref<13x16x128xf32, #tpu.memory_space<vmem>>, vector<1x16x128xf32>
    %326 = vector.shape_cast %325 : vector<1x16x128xf32> to vector<16x128xf32>
    %327 = vector.shape_cast %278 : vector<16x128xf32> to vector<1x16x128xf32>
    tpu.vector_store %arg3[%c5_96, %c0_97, %c0_98], %327 {strides = array<i32>} : memref<13x16x128xf32, #tpu.memory_space<vmem>>, vector<1x16x128xf32>,
    %c6_99 = arith.constant 6 : index
    %c0_100 = arith.constant 0 : index
    %c0_101 = arith.constant 0 : index
    %328 = vector.load %arg3[%c6_99, %c0_100, %c0_101] : memref<13x16x128xf32, #tpu.memory_space<vmem>>, vector<1x16x128xf32>
    %329 = vector.shape_cast %328 : vector<1x16x128xf32> to vector<16x128xf32>
    %330 = vector.shape_cast %281 : vector<16x128xf32> to vector<1x16x128xf32>
    tpu.vector_store %arg3[%c6_99, %c0_100, %c0_101], %330 {strides = array<i32>} : memref<13x16x128xf32, #tpu.memory_space<vmem>>, vector<1x16x128xf32>,
    %c7_102 = arith.constant 7 : index
    %c0_103 = arith.constant 0 : index
    %c0_104 = arith.constant 0 : index
    %331 = vector.load %arg3[%c7_102, %c0_103, %c0_104] : memref<13x16x128xf32, #tpu.memory_space<vmem>>, vector<1x16x128xf32>
    %332 = vector.shape_cast %331 : vector<1x16x128xf32> to vector<16x128xf32>
    %333 = vector.shape_cast %283 : vector<16x128xf32> to vector<1x16x128xf32>
    tpu.vector_store %arg3[%c7_102, %c0_103, %c0_104], %333 {strides = array<i32>} : memref<13x16x128xf32, #tpu.memory_space<vmem>>, vector<1x16x128xf32>,
    %c8_105 = arith.constant 8 : index
    %c0_106 = arith.constant 0 : index
    %c0_107 = arith.constant 0 : index
    %334 = vector.load %arg3[%c8_105, %c0_106, %c0_107] : memref<13x16x128xf32, #tpu.memory_space<vmem>>, vector<1x16x128xf32>
    %335 = vector.shape_cast %334 : vector<1x16x128xf32> to vector<16x128xf32>
    %336 = vector.shape_cast %284 : vector<16x128xf32> to vector<1x16x128xf32>
    tpu.vector_store %arg3[%c8_105, %c0_106, %c0_107], %336 {strides = array<i32>} : memref<13x16x128xf32, #tpu.memory_space<vmem>>, vector<1x16x128xf32>,
    %c9_108 = arith.constant 9 : index
    %c0_109 = arith.constant 0 : index
    %c0_110 = arith.constant 0 : index
    %337 = vector.load %arg3[%c9_108, %c0_109, %c0_110] : memref<13x16x128xf32, #tpu.memory_space<vmem>>, vector<1x16x128xf32>
    %338 = vector.shape_cast %337 : vector<1x16x128xf32> to vector<16x128xf32>
    %339 = vector.shape_cast %285 : vector<16x128xf32> to vector<1x16x128xf32>
    tpu.vector_store %arg3[%c9_108, %c0_109, %c0_110], %339 {strides = array<i32>} : memref<13x16x128xf32, #tpu.memory_space<vmem>>, vector<1x16x128xf32>,
    %c10 = arith.constant 10 : index
    %c0_111 = arith.constant 0 : index
    %c0_112 = arith.constant 0 : index
    %340 = vector.load %arg3[%c10, %c0_111, %c0_112] : memref<13x16x128xf32, #tpu.memory_space<vmem>>, vector<1x16x128xf32>
    %341 = vector.shape_cast %340 : vector<1x16x128xf32> to vector<16x128xf32>
    %342 = vector.shape_cast %307 : vector<16x128xf32> to vector<1x16x128xf32>
    tpu.vector_store %arg3[%c10, %c0_111, %c0_112], %342 {strides = array<i32>} : memref<13x16x128xf32, #tpu.memory_space<vmem>>, vector<1x16x128xf32>,
    %c11 = arith.constant 11 : index
    %c0_113 = arith.constant 0 : index
    %c0_114 = arith.constant 0 : index
    %343 = vector.load %arg3[%c11, %c0_113, %c0_114] : memref<13x16x128xf32, #tpu.memory_space<vmem>>, vector<1x16x128xf32>
    %344 = vector.shape_cast %343 : vector<1x16x128xf32> to vector<16x128xf32>
    %345 = vector.shape_cast %308 : vector<16x128xf32> to vector<1x16x128xf32>
    tpu.vector_store %arg3[%c11, %c0_113, %c0_114], %345 {strides = array<i32>} : memref<13x16x128xf32, #tpu.memory_space<vmem>>, vector<1x16x128xf32>,
    %c12 = arith.constant 12 : index
    %c0_115 = arith.constant 0 : index
    %c0_116 = arith.constant 0 : index
    %346 = vector.load %arg3[%c12, %c0_115, %c0_116] : memref<13x16x128xf32, #tpu.memory_space<vmem>>, vector<1x16x128xf32>
    %347 = vector.shape_cast %346 : vector<1x16x128xf32> to vector<16x128xf32>
    %348 = vector.shape_cast %309 : vector<16x128xf32> to vector<1x16x128xf32>
    tpu.vector_store %arg3[%c12, %c0_115, %c0_116], %348 {strides = array<i32>} : memref<13x16x128xf32, #tpu.memory_space<vmem>>, vector<1x16x128xf32>,
    return
  }
  func.func @transform_0(%arg0: i32) -> (i32, i32, i32) {
    %c0_i32 = arith.constant 0 : i32
    %c0_i32_0 = arith.constant 0 : i32
    %c0_i32_1 = arith.constant 0 : i32
    return %c0_i32, %arg0, %c0_i32_0 : i32, i32, i32
  }
  func.func @transform_1(%arg0: i32) -> (i32, i32, i32) {
    %c0_i32 = arith.constant 0 : i32
    %c0_i32_0 = arith.constant 0 : i32
    %c0_i32_1 = arith.constant 0 : i32
    return %c0_i32, %arg0, %c0_i32_0 : i32, i32, i32
  }
  func.func @transform_2(%arg0: i32) -> (i32, i32, i32) {
    %c0_i32 = arith.constant 0 : i32
    %c0_i32_0 = arith.constant 0 : i32
    %c0_i32_1 = arith.constant 0 : i32
    return %c0_i32, %arg0, %c0_i32_0 : i32, i32, i32
  }
}

</mosaic_0001>

<llo_original>
// kernel: gaussian_avatar_pallas.1
$region0: #{gaussian_avatar_pallas.1}
  #allocation0 [shape = 'u32[]', space=smem, size = 0x4, offset = 0x4, fixed_abs, tag = 'smem constant byte address 0x4 - core index']
  #allocation1 [shape = 'u32[144,128]{1,0:T(1,128)}', space=vmem, size = 0x12000, scoped, tag = 'internal scratch']
  %s0 = inlined_call_operand.hbm [shape: f32[9,16,128], index: 0, kind: input, shape index: {}]
  %s1 = inlined_call_operand.hbm [shape: f32[10,16,128], index: 1, kind: input, shape index: {}]
  %s2 = inlined_call_operand.hbm [shape: f32[13,16,128], index: 2, kind: output, shape index: {}]
  %s3 = sld [smem:[#allocation0]]
  $region26: #{gaussian_avatar_pallas.1} parent=0
    _
  %s5 = ssub.s32 1, %s3
  %s6 = scalar_select 0, %s5, %s3
  $region1: #{gaussian_avatar_pallas.1} parent=0
    #allocation2 [shape = 'u8[73728]{0}', space=vmem, size = 0x12000, scoped, tag = 'input window, operand 0, single buffered']
    #allocation3 [shape = 's32[1]{0}', space=sflag, size = 0x4, scoped, tag = 'scoped memory for gaussian_avatar_pallas.1']
    #allocation4 [shape = 's32[1]{0}', space=sflag, size = 0x4, scoped, tag = 'scoped memory for gaussian_avatar_pallas.1']
    #allocation5 [shape = 'u8[81920]{0}', space=vmem, size = 0x14000, scoped, tag = 'input window, operand 1, single buffered']
    #allocation6 [shape = 's32[1]{0}', space=sflag, size = 0x4, scoped, tag = 'scoped memory for gaussian_avatar_pallas.1']
    #allocation7 [shape = 'u8[106496]{0}', space=vmem, size = 0x1a000, scoped, tag = 'output window, operand 0, single buffered']
    %7 = vsyncpa [#allocation3], 0
    %8 = vsyncpa [#allocation6], 0
    %9 = vsyncpa [#allocation4], 0
    // Predicated region
    $region2: #{gaussian_avatar_pallas.1} parent=1 // pred_check
      _
    $region3: #{gaussian_avatar_pallas.1} parent=1 // pred_check_branch
      %11 = sbr.rel (0) target = $region5
    $region4: #{gaussian_avatar_pallas.1} parent=1 // pred_region
      %s13 = ssub.s32 2304, 2304
      %14 = vsyncadd [#allocation3], %s13
      %s15 = sshll.u32 [#allocation2], 4
      %s16 = int_to_ptr.vmem [resolvable:$true] %s15
      %21 = dma.hbm_to_vmem [thread:$0]  %s0, 2304, %s16, [#allocation3], 128, 128, 8
    $region5: #{gaussian_avatar_pallas.1} parent=1 // pred_fallthru
      _
    // Predicated region
    $region6: #{gaussian_avatar_pallas.1} parent=1 // pred_check
      _
    $region7: #{gaussian_avatar_pallas.1} parent=1 // pred_check_branch
      %23 = sbr.rel (0) target = $region9
    $region8: #{gaussian_avatar_pallas.1} parent=1 // pred_region
      %s25 = ssub.s32 2560, 2560
      %26 = vsyncadd [#allocation6], %s25
      %s27 = sshll.u32 [#allocation5], 4
      %s28 = int_to_ptr.vmem [resolvable:$true] %s27
      %33 = dma.hbm_to_vmem [thread:$0]  %s1, 2560, %s28, [#allocation6], 128, 128, 8
    $region9: #{gaussian_avatar_pallas.1} parent=1 // pred_fallthru
      _
    // Predicated region
    $region10: #{gaussian_avatar_pallas.1} parent=1 // pred_check
      _
    $region11: #{gaussian_avatar_pallas.1} parent=1 // pred_check_branch
      %35 = sbr.rel (0) target = $region13
    $region12: #{gaussian_avatar_pallas.1} parent=1 // pred_region
      %36 = dma.done [#allocation3], 2304
    $region13: #{gaussian_avatar_pallas.1} parent=1 // pred_fallthru
      _
    // Predicated region
    $region14: #{gaussian_avatar_pallas.1} parent=1 // pred_check
      _
    $region15: #{gaussian_avatar_pallas.1} parent=1 // pred_check_branch
      %38 = sbr.rel (0) target = $region17
    $region16: #{gaussian_avatar_pallas.1} parent=1 // pred_region
      %39 = dma.done [#allocation6], 2560
    $region17: #{gaussian_avatar_pallas.1} parent=1 // pred_fallthru
      _
    %v40 = vld [vmem:[#allocation2] sm:$0xff]
    %v41 = vld [vmem:[#allocation2 + $0x8] sm:$0xff]
    %s42 = scalar_lea.vmem [#allocation2], 16
    %v43 = vld [vmem:[%s42] sm:$0xff]
    %v44 = vld [vmem:[%s42 + $0x8] sm:$0xff]
    %s45 = scalar_lea.vmem [#allocation2], 32
    %v46 = vld [vmem:[%s45] sm:$0xff]
    %v47 = vld [vmem:[%s45 + $0x8] sm:$0xff]
    %s48 = scalar_lea.vmem [#allocation2], 48
    %v49 = vld [vmem:[%s48] sm:$0xff]
    %v50 = vld [vmem:[%s48 + $0x8] sm:$0xff]
    %s51 = scalar_lea.vmem [#allocation2], 64
    %v52 = vld [vmem:[%s51] sm:$0xff]
    %v53 = vld [vmem:[%s51 + $0x8] sm:$0xff]
    %s54 = scalar_lea.vmem [#allocation2], 80
    %v55 = vld [vmem:[%s54] sm:$0xff]
    %v56 = vld [vmem:[%s54 + $0x8] sm:$0xff]
    %s57 = scalar_lea.vmem [#allocation2], 96
    %v58 = vld [vmem:[%s57] sm:$0xff]
    %v59 = vld [vmem:[%s57 + $0x8] sm:$0xff]
    %s60 = scalar_lea.vmem [#allocation2], 112
    %v61 = vld [vmem:[%s60] sm:$0xff]
    %v62 = vld [vmem:[%s60 + $0x8] sm:$0xff]
    %s63 = scalar_lea.vmem [#allocation2], 128
    %v64 = vld [vmem:[%s63] sm:$0xff]
    %v65 = vld [vmem:[%s63 + $0x8] sm:$0xff]
    %v66 = vld [vmem:[#allocation5] sm:$0xff]
    %v67 = vld [vmem:[#allocation5 + $0x8] sm:$0xff]
    %s68 = scalar_lea.vmem [#allocation5], 16
    %v69 = vld [vmem:[%s68] sm:$0xff]
    %v70 = vld [vmem:[%s68 + $0x8] sm:$0xff]
    %s71 = scalar_lea.vmem [#allocation5], 32
    %v72 = vld [vmem:[%s71] sm:$0xff]
    %v73 = vld [vmem:[%s71 + $0x8] sm:$0xff]
    %s74 = scalar_lea.vmem [#allocation5], 48
    %v75 = vld [vmem:[%s74] sm:$0xff]
    %v76 = vld [vmem:[%s74 + $0x8] sm:$0xff]
    %s77 = scalar_lea.vmem [#allocation5], 64
    %v78 = vld [vmem:[%s77] sm:$0xff]
    %v79 = vld [vmem:[%s77 + $0x8] sm:$0xff]
    %s80 = scalar_lea.vmem [#allocation5], 80
    %v81 = vld [vmem:[%s80] sm:$0xff]
    %v82 = vld [vmem:[%s80 + $0x8] sm:$0xff]
    %s83 = scalar_lea.vmem [#allocation5], 96
    %v84 = vld [vmem:[%s83] sm:$0xff]
    %v85 = vld [vmem:[%s83 + $0x8] sm:$0xff]
    %s86 = scalar_lea.vmem [#allocation5], 112
    %v87 = vld [vmem:[%s86] sm:$0xff]
    %v88 = vld [vmem:[%s86 + $0x8] sm:$0xff]
    %s89 = scalar_lea.vmem [#allocation5], 128
    %v90 = vld [vmem:[%s89] sm:$0xff]
    %v91 = vld [vmem:[%s89 + $0x8] sm:$0xff]
    %s92 = scalar_lea.vmem [#allocation5], 144
    %v93 = vld [vmem:[%s92] sm:$0xff]
    %v94 = vld [vmem:[%s92 + $0x8] sm:$0xff]
    %v95 = vsub.f32 %v49, %v40
    %v96 = vsub.f32 %v50, %v41
    %v97 = vsub.f32 %v52, %v43
    %v98 = vsub.f32 %v53, %v44
    %v99 = vsub.f32 %v55, %v46
    %v100 = vsub.f32 %v56, %v47
    %v101 = vsub.f32 %v58, %v40
    %v102 = vsub.f32 %v59, %v41
    %v103 = vsub.f32 %v61, %v43
    %v104 = vsub.f32 %v62, %v44
    %v105 = vsub.f32 %v64, %v46
    %v106 = vsub.f32 %v65, %v47
    %v107 = vmul.f32 %v95, %v95
    %v108 = vmul.f32 %v96, %v96
    %v109 = vmul.f32 %v97, %v97
    %v110 = vmul.f32 %v98, %v98
    %v111 = vadd.f32 %v107, %v109
    %v112 = vadd.f32 %v108, %v110
    %v113 = vmul.f32 %v99, %v99
    %v114 = vmul.f32 %v100, %v100
    %v115 = vadd.f32 %v111, %v113
    %v116 = vadd.f32 %v112, %v114
    %v117 = vmax.f32 %v115, 1e-20
    %v118 = vmax.f32 %v116, 1e-20
    %v119 = vrsqrt.pop %v117
    %v120 = vrsqrt.pop %v118
    %v121 = vmul.f32 %v95, %v119
    %v122 = vmul.f32 %v96, %v120
    %v123 = vmul.f32 %v97, %v119
    %v124 = vmul.f32 %v98, %v120
    %v125 = vmul.f32 %v99, %v119
    %v126 = vmul.f32 %v100, %v120
    %v127 = vmul.f32 %v115, %v119
    %v128 = vmul.f32 %v116, %v120
    %v129 = vmul.f32 %v123, %v105
    %v130 = vmul.f32 %v124, %v106
    %v131 = vmul.f32 %v125, %v103
    %v132 = vmul.f32 %v126, %v104
    %v133 = vsub.f32 %v129, %v131
    %v134 = vsub.f32 %v130, %v132
    %v135 = vmul.f32 %v125, %v101
    %v136 = vmul.f32 %v126, %v102
    %v137 = vmul.f32 %v121, %v105
    %v138 = vmul.f32 %v122, %v106
    %v139 = vsub.f32 %v135, %v137
    %v140 = vsub.f32 %v136, %v138
    %v141 = vmul.f32 %v121, %v103
    %v142 = vmul.f32 %v122, %v104
    %v143 = vmul.f32 %v123, %v101
    %v144 = vmul.f32 %v124, %v102
    %v145 = vsub.f32 %v141, %v143
    %v146 = vsub.f32 %v142, %v144
    %v147 = vmul.f32 %v133, %v133
    %v148 = vmul.f32 %v134, %v134
    %v149 = vmul.f32 %v139, %v139
    %v150 = vmul.f32 %v140, %v140
    %v151 = vadd.f32 %v147, %v149
    %v152 = vadd.f32 %v148, %v150
    %v153 = vmul.f32 %v145, %v145
    %v154 = vmul.f32 %v146, %v146
    %v155 = vadd.f32 %v151, %v153
    %v156 = vadd.f32 %v152, %v154
    %v157 = vmax.f32 %v155, 1e-20
    %v158 = vmax.f32 %v156, 1e-20
    %v159 = vrsqrt.pop %v157
    %v160 = vrsqrt.pop %v158
    %v161 = vmul.f32 %v133, %v159
    %v162 = vmul.f32 %v134, %v160
    %v163 = vmul.f32 %v139, %v159
    %v164 = vmul.f32 %v140, %v160
    %v165 = vmul.f32 %v145, %v159
    %v166 = vmul.f32 %v146, %v160
    %v167 = vmul.f32 %v163, %v125
    %v168 = vmul.f32 %v164, %v126
    %v169 = vmul.f32 %v165, %v123
    %v170 = vmul.f32 %v166, %v124
    %v171 = vsub.f32 %v167, %v169
    %v172 = vsub.f32 %v168, %v170
    %v173 = vmul.f32 %v165, %v121
    %v174 = vmul.f32 %v166, %v122
    %v175 = vmul.f32 %v161, %v125
    %v176 = vmul.f32 %v162, %v126
    %v177 = vsub.f32 %v173, %v175
    %v178 = vsub.f32 %v174, %v176
    %v179 = vmul.f32 %v161, %v123
    %v180 = vmul.f32 %v162, %v124
    %v181 = vmul.f32 %v163, %v121
    %v182 = vmul.f32 %v164, %v122
    %v183 = vsub.f32 %v179, %v181
    %v184 = vsub.f32 %v180, %v182
    %v185 = vmul.f32 %v171, %v171
    %v186 = vmul.f32 %v172, %v172
    %v187 = vmul.f32 %v177, %v177
    %v188 = vmul.f32 %v178, %v178
    %v189 = vadd.f32 %v185, %v187
    %v190 = vadd.f32 %v186, %v188
    %v191 = vmul.f32 %v183, %v183
    %v192 = vmul.f32 %v184, %v184
    %v193 = vadd.f32 %v189, %v191
    %v194 = vadd.f32 %v190, %v192
    %v195 = vmax.f32 %v193, 1e-20
    %v196 = vmax.f32 %v194, 1e-20
    %v197 = vrsqrt.pop %v195
    %v198 = vrsqrt.pop %v196
    %v199 = vsub.f32 0.0, %v171
    %v200 = vsub.f32 0.0, %v172
    %v201 = vmul.f32 %v199, %v197
    %v202 = vmul.f32 %v200, %v198
    %v203 = vsub.f32 0.0, %v177
    %v204 = vsub.f32 0.0, %v178
    %v205 = vmul.f32 %v203, %v197
    %v206 = vmul.f32 %v204, %v198
    %v207 = vsub.f32 0.0, %v183
    %v208 = vsub.f32 0.0, %v184
    %v209 = vmul.f32 %v207, %v197
    %v210 = vmul.f32 %v208, %v198
    %v211 = vmul.f32 %v201, %v101
    %v212 = vmul.f32 %v202, %v102
    %v213 = vmul.f32 %v205, %v103
    %v214 = vmul.f32 %v206, %v104
    %v215 = vadd.f32 %v211, %v213
    %v216 = vadd.f32 %v212, %v214
    %v217 = vmul.f32 %v209, %v105
    %v218 = vmul.f32 %v210, %v106
    %v219 = vadd.f32 %v215, %v217
    %v220 = vadd.f32 %v216, %v218
    %v221 = vand.u32 2147483647, %v219
    %v222 = vand.u32 2147483647, %v220
    %v223 = vadd.f32 %v127, %v221
    %v224 = vadd.f32 %v128, %v222
    %v225 = vmul.f32 %v223, 0.5
    %v226 = vmul.f32 %v224, 0.5
    %v227 = vadd.f32 %v40, %v49
    %v228 = vadd.f32 %v41, %v50
    %v229 = vadd.f32 %v227, %v58
    %v230 = vadd.f32 %v228, %v59
    %v231 = vmul.f32 %v229, 0.33333334
    %v232 = vmul.f32 %v230, 0.33333334
    %v233 = vadd.f32 %v43, %v52
    %v234 = vadd.f32 %v44, %v53
    %v235 = vadd.f32 %v233, %v61
    %v236 = vadd.f32 %v234, %v62
    %v237 = vmul.f32 %v235, 0.33333334
    %v238 = vmul.f32 %v236, 0.33333334
    %v239 = vadd.f32 %v46, %v55
    %v240 = vadd.f32 %v47, %v56
    %v241 = vadd.f32 %v239, %v64
    %v242 = vadd.f32 %v240, %v65
    %v243 = vmul.f32 %v241, 0.33333334
    %v244 = vmul.f32 %v242, 0.33333334
    %v245 = vadd.f32 %v121, 1.0
    %v246 = vadd.f32 %v122, 1.0
    %v247 = vadd.f32 %v245, %v163
    %v248 = vadd.f32 %v246, %v164
    %v249 = vadd.f32 %v247, %v209
    %v250 = vadd.f32 %v248, %v210
    %v251 = vmax.f32 %v249, 0.0
    %v252 = vmax.f32 %v250, 0.0
    %v253 = vrsqrt.pop %v251
    %v254 = vmul.f32 %v251, %v253
    %vm255 = vcmp.eq.f32.partialorder %v251, inf
    %v256 = vsel %vm255, %v251, %v254
    %vm257 = vcmp.eq.f32.partialorder %v251, 0.0
    %v258 = vand.u32 %v251, 2147483648
    %v259 = vsel %vm257, %v258, %v256
    %v260 = vrsqrt.pop %v252
    %v261 = vmul.f32 %v252, %v260
    %vm262 = vcmp.eq.f32.partialorder %v252, inf
    %v263 = vsel %vm262, %v252, %v261
    %vm264 = vcmp.eq.f32.partialorder %v252, 0.0
    %v265 = vand.u32 %v252, 2147483648
    %v266 = vsel %vm264, %v265, %v263
    %v267 = vsub.f32 %v245, %v163
    %v268 = vsub.f32 %v246, %v164
    %v269 = vsub.f32 %v267, %v209
    %v270 = vsub.f32 %v268, %v210
    %v271 = vmax.f32 %v269, 0.0
    %v272 = vmax.f32 %v270, 0.0
    %v273 = vrsqrt.pop %v271
    %v274 = vmul.f32 %v271, %v273
    %vm275 = vcmp.eq.f32.partialorder %v271, inf
    %v276 = vsel %vm275, %v271, %v274
    %vm277 = vcmp.eq.f32.partialorder %v271, 0.0
    %v278 = vand.u32 %v271, 2147483648
    %v279 = vsel %vm277, %v278, %v276
    %v280 = vrsqrt.pop %v272
    %v281 = vmul.f32 %v272, %v280
    %vm282 = vcmp.eq.f32.partialorder %v272, inf
    %v283 = vsel %vm282, %v272, %v281
    %vm284 = vcmp.eq.f32.partialorder %v272, 0.0
    %v285 = vand.u32 %v272, 2147483648
    %v286 = vsel %vm284, %v285, %v283
    %v287 = vsub.f32 1.0, %v121
    %v288 = vsub.f32 1.0, %v122
    %v289 = vadd.f32 %v287, %v163
    %v290 = vadd.f32 %v288, %v164
    %v291 = vsub.f32 %v289, %v209
    %v292 = vsub.f32 %v290, %v210
    %v293 = vmax.f32 %v291, 0.0
    %v294 = vmax.f32 %v292, 0.0
    %v295 = vrsqrt.pop %v293
    %v296 = vmul.f32 %v293, %v295
    %vm297 = vcmp.eq.f32.partialorder %v293, inf
    %v298 = vsel %vm297, %v293, %v296
    %vm299 = vcmp.eq.f32.partialorder %v293, 0.0
    %v300 = vand.u32 %v293, 2147483648
    %v301 = vsel %vm299, %v300, %v298
    %v302 = vrsqrt.pop %v294
    %v303 = vmul.f32 %v294, %v302
    %vm304 = vcmp.eq.f32.partialorder %v294, inf
    %v305 = vsel %vm304, %v294, %v303
    %vm306 = vcmp.eq.f32.partialorder %v294, 0.0
    %v307 = vand.u32 %v294, 2147483648
    %v308 = vsel %vm306, %v307, %v305
    %v309 = vsub.f32 %v287, %v163
    %v310 = vsub.f32 %v288, %v164
    %v311 = vadd.f32 %v309, %v209
    %v312 = vadd.f32 %v310, %v210
    %v313 = vmax.f32 %v311, 0.0
    %v314 = vmax.f32 %v312, 0.0
    %v315 = vrsqrt.pop %v313
    %v316 = vmul.f32 %v313, %v315
    %vm317 = vcmp.eq.f32.partialorder %v313, inf
    %v318 = vsel %vm317, %v313, %v316
    %vm319 = vcmp.eq.f32.partialorder %v313, 0.0
    %v320 = vand.u32 %v313, 2147483648
    %v321 = vsel %vm319, %v320, %v318
    %v322 = vrsqrt.pop %v314
    %v323 = vmul.f32 %v314, %v322
    %vm324 = vcmp.eq.f32.partialorder %v314, inf
    %v325 = vsel %vm324, %v314, %v323
    %vm326 = vcmp.eq.f32.partialorder %v314, 0.0
    %v327 = vand.u32 %v314, 2147483648
    %v328 = vsel %vm326, %v327, %v325
    %v329 = vmul.f32 %v259, %v259
    %v330 = vmul.f32 %v266, %v266
    %v331 = vsub.f32 %v165, %v205
    %v332 = vsub.f32 %v166, %v206
    %v333 = vsub.f32 %v201, %v125
    %v334 = vsub.f32 %v202, %v126
    %v335 = vsub.f32 %v123, %v161
    %v336 = vsub.f32 %v124, %v162
    %v337 = vmul.f32 %v279, %v279
    %v338 = vmul.f32 %v286, %v286
    %v339 = vadd.f32 %v123, %v161
    %v340 = vadd.f32 %v124, %v162
    %v341 = vadd.f32 %v201, %v125
    %v342 = vadd.f32 %v202, %v126
    %v343 = vmul.f32 %v301, %v301
    %v344 = vmul.f32 %v308, %v308
    %v345 = vadd.f32 %v205, %v165
    %v346 = vadd.f32 %v206, %v166
    %v347 = vmul.f32 %v321, %v321
    %v348 = vmul.f32 %v328, %v328
    %v349 = vmax.f32 %v259, 0.1
    %v350 = vmax.f32 %v266, 0.1
    %v351 = vrcp.pop %v349
    %v352 = vmul.f32 0.5, %v351
    %v353 = vrcp.pop %v350
    %v354 = vmul.f32 0.5, %v353
    %v355 = vmax.f32 %v279, 0.1
    %v356 = vmax.f32 %v286, 0.1
    %v357 = vrcp.pop %v355
    %v358 = vmul.f32 0.5, %v357
    %v359 = vrcp.pop %v356
    %v360 = vmul.f32 0.5, %v359
    %v361 = vmax.f32 %v301, 0.1
    %v362 = vmax.f32 %v308, 0.1
    %v363 = vrcp.pop %v361
    %v364 = vmul.f32 0.5, %v363
    %v365 = vrcp.pop %v362
    %v366 = vmul.f32 0.5, %v365
    %v367 = vmax.f32 %v321, 0.1
    %v368 = vmax.f32 %v328, 0.1
    %v369 = vrcp.pop %v367
    %v370 = vmul.f32 0.5, %v369
    %v371 = vrcp.pop %v368
    %v372 = vmul.f32 0.5, %v371
    %vm373 = vcmp.ge.f32.partialorder %v259, %v279
    %vm374 = vcmp.ge.f32.partialorder %v266, %v286
    %vm375 = vcmp.ge.f32.partialorder %v259, %v301
    %vm376 = vcmp.ge.f32.partialorder %v266, %v308
    %vm377 = vmand %vm373, %vm375
    %vm378 = vmand %vm374, %vm376
    %vm379 = vcmp.ge.f32.partialorder %v259, %v321
    %vm380 = vcmp.ge.f32.partialorder %v266, %v328
    %vm381 = vmand %vm377, %vm379
    %vm382 = vmand %vm378, %vm380
    %vm383 = vmxor %vm381, 1
    %vm384 = vmxor %vm382, 1
    %vm385 = vcmp.ge.f32.partialorder %v279, %v301
    %vm386 = vcmp.ge.f32.partialorder %v286, %v308
    %vm387 = vmand %vm383, %vm385
    %vm388 = vmand %vm384, %vm386
    %vm389 = vcmp.ge.f32.partialorder %v279, %v321
    %vm390 = vcmp.ge.f32.partialorder %v286, %v328
    %vm391 = vmand %vm387, %vm389
    %vm392 = vmand %vm388, %vm390
    %vm393 = vmxor %vm391, 1
    %vm394 = vmxor %vm392, 1
    %vm395 = vmand %vm383, %vm393
    %vm396 = vmand %vm384, %vm394
    %vm397 = vcmp.ge.f32.partialorder %v301, %v321
    %vm398 = vcmp.ge.f32.partialorder %v308, %v328
    %vm399 = vmand %vm395, %vm397
    %vm400 = vmand %vm396, %vm398
    %v401 = vmul.f32 %v329, %v352
    %v402 = vmul.f32 %v330, %v354
    %v403 = vmul.f32 %v331, %v358
    %v404 = vmul.f32 %v332, %v360
    %v405 = vmul.f32 %v333, %v364
    %v406 = vmul.f32 %v334, %v366
    %v407 = vmul.f32 %v335, %v370
    %v408 = vmul.f32 %v336, %v372
    %v409 = vsel %vm399, %v405, %v407
    %v410 = vsel %vm400, %v406, %v408
    %v411 = vsel %vm391, %v403, %v409
    %v412 = vsel %vm392, %v404, %v410
    %v413 = vsel %vm381, %v401, %v411
    %v414 = vsel %vm382, %v402, %v412
    %v415 = vmul.f32 %v331, %v352
    %v416 = vmul.f32 %v332, %v354
    %v417 = vmul.f32 %v337, %v358
    %v418 = vmul.f32 %v338, %v360
    %v419 = vmul.f32 %v339, %v364
    %v420 = vmul.f32 %v340, %v366
    %v421 = vmul.f32 %v341, %v370
    %v422 = vmul.f32 %v342, %v372
    %v423 = vsel %vm399, %v419, %v421
    %v424 = vsel %vm400, %v420, %v422
    %v425 = vsel %vm391, %v417, %v423
    %v426 = vsel %vm392, %v418, %v424
    %v427 = vsel %vm381, %v415, %v425
    %v428 = vsel %vm382, %v416, %v426
    %v429 = vmul.f32 %v333, %v352
    %v430 = vmul.f32 %v334, %v354
    %v431 = vmul.f32 %v339, %v358
    %v432 = vmul.f32 %v340, %v360
    %v433 = vmul.f32 %v343, %v364
    %v434 = vmul.f32 %v344, %v366
    %v435 = vmul.f32 %v345, %v370
    %v436 = vmul.f32 %v346, %v372
    %v437 = vsel %vm399, %v433, %v435
    %v438 = vsel %vm400, %v434, %v436
    %v439 = vsel %vm391, %v431, %v437
    %v440 = vsel %vm392, %v432, %v438
    %v441 = vsel %vm381, %v429, %v439
    %v442 = vsel %vm382, %v430, %v440
    %v443 = vmul.f32 %v335, %v352
    %v444 = vmul.f32 %v336, %v354
    %v445 = vmul.f32 %v341, %v358
    %v446 = vmul.f32 %v342, %v360
    %v447 = vmul.f32 %v345, %v364
    %v448 = vmul.f32 %v346, %v366
    %v449 = vmul.f32 %v347, %v370
    %v450 = vmul.f32 %v348, %v372
    %v451 = vsel %vm399, %v447, %v449
    %v452 = vsel %vm400, %v448, %v450
    %v453 = vsel %vm391, %v445, %v451
    %v454 = vsel %vm392, %v446, %v452
    %v455 = vsel %vm381, %v443, %v453
    %v456 = vsel %vm382, %v444, %v454
    %v457 = vmul.f32 %v413, %v413
    %v458 = vmul.f32 %v414, %v414
    %v459 = vmul.f32 %v427, %v427
    %v460 = vmul.f32 %v428, %v428
    %v461 = vadd.f32 %v457, %v459
    %v462 = vadd.f32 %v458, %v460
    %v463 = vmul.f32 %v441, %v441
    %v464 = vmul.f32 %v442, %v442
    %v465 = vadd.f32 %v461, %v463
    %v466 = vadd.f32 %v462, %v464
    %v467 = vmul.f32 %v455, %v455
    %v468 = vmul.f32 %v456, %v456
    %v469 = vadd.f32 %v465, %v467
    %v470 = vadd.f32 %v466, %v468
    %v471 = vmax.f32 %v469, 1e-24
    %v472 = vmax.f32 %v470, 1e-24
    %v473 = vrsqrt.pop %v471
    %v474 = vrsqrt.pop %v472
    %v475 = vmul.f32 %v413, %v473
    %v476 = vmul.f32 %v414, %v474
    %v477 = vmul.f32 %v427, %v473
    %v478 = vmul.f32 %v428, %v474
    %v479 = vmul.f32 %v441, %v473
    %v480 = vmul.f32 %v442, %v474
    %v481 = vmul.f32 %v455, %v473
    %v482 = vmul.f32 %v456, %v474
    %v483 = vmul.f32 %v475, %v84
    %v484 = vmul.f32 %v476, %v85
    %v485 = vmul.f32 %v477, %v87
    %v486 = vmul.f32 %v478, %v88
    %v487 = vsub.f32 %v483, %v485
    %v488 = vsub.f32 %v484, %v486
    %v489 = vmul.f32 %v479, %v90
    %v490 = vmul.f32 %v480, %v91
    %v491 = vsub.f32 %v487, %v489
    %v492 = vsub.f32 %v488, %v490
    %v493 = vmul.f32 %v481, %v93
    %v494 = vmul.f32 %v482, %v94
    %v495 = vsub.f32 %v491, %v493
    %v496 = vsub.f32 %v492, %v494
    %v497 = vmul.f32 %v475, %v87
    %v498 = vmul.f32 %v476, %v88
    %v499 = vmul.f32 %v477, %v84
    %v500 = vmul.f32 %v478, %v85
    %v501 = vadd.f32 %v497, %v499
    %v502 = vadd.f32 %v498, %v500
    %v503 = vmul.f32 %v479, %v93
    %v504 = vmul.f32 %v480, %v94
    %v505 = vadd.f32 %v501, %v503
    %v506 = vadd.f32 %v502, %v504
    %v507 = vmul.f32 %v481, %v90
    %v508 = vmul.f32 %v482, %v91
    %v509 = vsub.f32 %v505, %v507
    %v510 = vsub.f32 %v506, %v508
    %v511 = vmul.f32 %v475, %v90
    %v512 = vmul.f32 %v476, %v91
    %v513 = vmul.f32 %v477, %v93
    %v514 = vmul.f32 %v478, %v94
    %v515 = vsub.f32 %v511, %v513
    %v516 = vsub.f32 %v512, %v514
    %v517 = vmul.f32 %v479, %v84
    %v518 = vmul.f32 %v480, %v85
    %v519 = vadd.f32 %v515, %v517
    %v520 = vadd.f32 %v516, %v518
    %v521 = vmul.f32 %v481, %v87
    %v522 = vmul.f32 %v482, %v88
    %v523 = vadd.f32 %v519, %v521
    %v524 = vadd.f32 %v520, %v522
    %v525 = vmul.f32 %v475, %v93
    %v526 = vmul.f32 %v476, %v94
    %v527 = vmul.f32 %v477, %v90
    %v528 = vmul.f32 %v478, %v91
    %v529 = vadd.f32 %v525, %v527
    %v530 = vadd.f32 %v526, %v528
    %v531 = vmul.f32 %v479, %v87
    %v532 = vmul.f32 %v480, %v88
    %v533 = vsub.f32 %v529, %v531
    %v534 = vsub.f32 %v530, %v532
    %v535 = vmul.f32 %v481, %v84
    %v536 = vmul.f32 %v482, %v85
    %v537 = vadd.f32 %v533, %v535
    %v538 = vadd.f32 %v534, %v536
    %vm539 = vcmp.lt.f32.partialorder %v495, 0.0
    %vm540 = vcmp.lt.f32.partialorder %v496, 0.0
    %v541 = vsub.f32 0.0, %v495
    %v542 = vsub.f32 0.0, %v496
    %v543 = vsel %vm539, %v541, %v495
    %v544 = vsel %vm540, %v542, %v496
    %v545 = vsub.f32 0.0, %v509
    %v546 = vsub.f32 0.0, %v510
    %v547 = vsel %vm539, %v545, %v509
    %v548 = vsel %vm540, %v546, %v510
    %v549 = vsub.f32 0.0, %v523
    %v550 = vsub.f32 0.0, %v524
    %v551 = vsel %vm539, %v549, %v523
    %v552 = vsel %vm540, %v550, %v524
    %v553 = vsub.f32 0.0, %v537
    %v554 = vsub.f32 0.0, %v538
    %v555 = vsel %vm539, %v553, %v537
    %v556 = vsel %vm540, %v554, %v538
    %v557 = vlog2.pop %v225
    %v558 = vmul.f32 %v557, 0.6931472
    %v559 = vlog2.pop %v226
    %v560 = vmul.f32 %v559, 0.6931472
    %v561 = vadd.f32 %v75, %v558
    %v562 = vadd.f32 %v76, %v560
    %v563 = vadd.f32 %v78, %v558
    %v564 = vadd.f32 %v79, %v560
    %v565 = vadd.f32 %v81, %v558
    %v566 = vadd.f32 %v82, %v560
    %v567 = vmul.f32 %v121, %v66
    %v568 = vmul.f32 %v122, %v67
    %v569 = vmul.f32 %v161, %v69
    %v570 = vmul.f32 %v162, %v70
    %v571 = vadd.f32 %v567, %v569
    %v572 = vadd.f32 %v568, %v570
    %v573 = vmul.f32 %v201, %v72
    %v574 = vmul.f32 %v202, %v73
    %v575 = vadd.f32 %v571, %v573
    %v576 = vadd.f32 %v572, %v574
    %v577 = vmul.f32 %v575, %v225
    %v578 = vmul.f32 %v576, %v226
    %v579 = vadd.f32 %v577, %v231
    %v580 = vadd.f32 %v578, %v232
    %v581 = vmul.f32 %v123, %v66
    %v582 = vmul.f32 %v124, %v67
    %v583 = vmul.f32 %v163, %v69
    %v584 = vmul.f32 %v164, %v70
    %v585 = vadd.f32 %v581, %v583
    %v586 = vadd.f32 %v582, %v584
    %v587 = vmul.f32 %v205, %v72
    %v588 = vmul.f32 %v206, %v73
    %v589 = vadd.f32 %v585, %v587
    %v590 = vadd.f32 %v586, %v588
    %v591 = vmul.f32 %v589, %v225
    %v592 = vmul.f32 %v590, %v226
    %v593 = vadd.f32 %v591, %v237
    %v594 = vadd.f32 %v592, %v238
    %v595 = vmul.f32 %v125, %v66
    %v596 = vmul.f32 %v126, %v67
    %v597 = vmul.f32 %v165, %v69
    %v598 = vmul.f32 %v166, %v70
    %v599 = vadd.f32 %v595, %v597
    %v600 = vadd.f32 %v596, %v598
    %v601 = vmul.f32 %v209, %v72
    %v602 = vmul.f32 %v210, %v73
    %v603 = vadd.f32 %v599, %v601
    %v604 = vadd.f32 %v600, %v602
    %v605 = vmul.f32 %v603, %v225
    %v606 = vmul.f32 %v604, %v226
    %v607 = vadd.f32 %v605, %v243
    %v608 = vadd.f32 %v606, %v244
    %v609 = vmul.f32 %v75, 1.442695
    %v610 = vpow.pop %v609
    %v611 = vmul.f32 %v76, 1.442695
    %v612 = vpow.pop %v611
    %v613 = vmul.f32 %v78, 1.442695
    %v614 = vpow.pop %v613
    %v615 = vmul.f32 %v79, 1.442695
    %v616 = vpow.pop %v615
    %v617 = vmul.f32 %v81, 1.442695
    %v618 = vpow.pop %v617
    %v619 = vmul.f32 %v82, 1.442695
    %v620 = vpow.pop %v619
    %621 = vst [vmem:[#allocation7] sm:$0xff] %v579
    %622 = vst [vmem:[#allocation7 + $0x8] sm:$0xff] %v580
    %s623 = scalar_lea.vmem [#allocation7], 16
    %624 = vst [vmem:[%s623] sm:$0xff] %v593
    %625 = vst [vmem:[%s623 + $0x8] sm:$0xff] %v594
    %s626 = scalar_lea.vmem [#allocation7], 32
    %627 = vst [vmem:[%s626] sm:$0xff] %v607
    %628 = vst [vmem:[%s626 + $0x8] sm:$0xff] %v608
    %s629 = scalar_lea.vmem [#allocation7], 48
    %630 = vst [vmem:[%s629] sm:$0xff] %v543
    %631 = vst [vmem:[%s629 + $0x8] sm:$0xff] %v544
    %s632 = scalar_lea.vmem [#allocation7], 64
    %633 = vst [vmem:[%s632] sm:$0xff] %v547
    %634 = vst [vmem:[%s632 + $0x8] sm:$0xff] %v548
    %s635 = scalar_lea.vmem [#allocation7], 80
    %636 = vst [vmem:[%s635] sm:$0xff] %v551
    %637 = vst [vmem:[%s635 + $0x8] sm:$0xff] %v552
    %s638 = scalar_lea.vmem [#allocation7], 96
    %639 = vst [vmem:[%s638] sm:$0xff] %v555
    %640 = vst [vmem:[%s638 + $0x8] sm:$0xff] %v556
    %s641 = scalar_lea.vmem [#allocation7], 112
    %642 = vst [vmem:[%s641] sm:$0xff] %v561
    %643 = vst [vmem:[%s641 + $0x8] sm:$0xff] %v562
    %s644 = scalar_lea.vmem [#allocation7], 128
    %645 = vst [vmem:[%s644] sm:$0xff] %v563
    %646 = vst [vmem:[%s644 + $0x8] sm:$0xff] %v564
    %s647 = scalar_lea.vmem [#allocation7], 144
    %648 = vst [vmem:[%s647] sm:$0xff] %v565
    %649 = vst [vmem:[%s647 + $0x8] sm:$0xff] %v566
    %s650 = scalar_lea.vmem [#allocation7], 160
    %651 = vst [vmem:[%s650] sm:$0xff] %v610
    %652 = vst [vmem:[%s650 + $0x8] sm:$0xff] %v612
    %s653 = scalar_lea.vmem [#allocation7], 176
    %654 = vst [vmem:[%s653] sm:$0xff] %v614
    %655 = vst [vmem:[%s653 + $0x8] sm:$0xff] %v616
    %s656 = scalar_lea.vmem [#allocation7], 192
    %657 = vst [vmem:[%s656] sm:$0xff] %v618
    %658 = vst [vmem:[%s656 + $0x8] sm:$0xff] %v620
    // Predicated region
    $region18: #{gaussian_avatar_pallas.1} parent=1 // pred_check
      _
    $region19: #{gaussian_avatar_pallas.1} parent=1 // pred_check_branch
      %660 = sbr.rel (0) target = $region21
    $region20: #{gaussian_avatar_pallas.1} parent=1 // pred_region
      %s662 = ssub.s32 3328, 3328
      %663 = vsyncadd [#allocation4], %s662
      %s664 = sshll.u32 [#allocation7], 4
      %s665 = int_to_ptr.vmem [resolvable:$true] %s664
      %670 = dma.vmem_to_hbm [thread:$0]  %s665, 3328, %s2, [#allocation4], 128, 128, 8
    $region21: #{gaussian_avatar_pallas.1} parent=1 // pred_fallthru
      _
    // Predicated region
    $region22: #{gaussian_avatar_pallas.1} parent=1 // pred_check
      _
    $region23: #{gaussian_avatar_pallas.1} parent=1 // pred_check_branch
      %672 = sbr.rel (0) target = $region25
    $region24: #{gaussian_avatar_pallas.1} parent=1 // pred_region
      %673 = dma.done [#allocation4], 3328
    $region25: #{gaussian_avatar_pallas.1} parent=1 // pred_fallthru
      _
    %674 = vsyncpa [#allocation3], 1
    %675 = vsyncpa [#allocation6], 1
    %676 = vsyncpa [#allocation4], 1

</llo_original>
